<compile_context>
chip_gen: v7x
topology: tpu7x:2x2x1
jax: 0.10.0
libtpu: 0.0.40
codegen_flags: <defaults>
</compile_context>

<pallas_src>
import functools

import jax
import jax.numpy as jnp
from jax.experimental import pallas as pl
from jax.experimental.pallas import tpu as pltpu

_LANE = 128
_SUBLANE = 8


def _act_fun_kernel(x_ref, o_ref, *, compute_dtype):
    x = x_ref[...].astype(compute_dtype)
    o_ref[...] = (jax.nn.sigmoid(x) * 100.0).astype(o_ref.dtype)


def _chip_info():
    """Generation-specific tuning knobs, with a conservative fallback."""
    kind = ""
    try:
        kind = jax.devices()[0].device_kind.lower()
    except Exception:
        pass
    if "v7" in kind:
        # 2 TensorCores, 64 MiB physical VMEM: 8 MiB blocks, 4 double-buffered
        # buffers = 32 MiB; raise the scoped limit explicitly to be safe.
        return dict(target_block_bytes=8 << 20, num_tc=2, bf16_math=True,
                    vmem_limit=48 << 20)
    if "v6" in kind:
        # Single TC, 32 MiB default scoped / 128 MiB physical.
        return dict(target_block_bytes=4 << 20, num_tc=1, bf16_math=True,
                    vmem_limit=None)
    if "v5e" in kind or "v5 lite" in kind or "v5lite" in kind:
        # 16 MiB default scoped VMEM; no bf16 VPU/EUP -> f32 math.
        return dict(target_block_bytes=2 << 20, num_tc=1, bf16_math=False,
                    vmem_limit=None)
    # Unknown chip (v4/v5p/interpret): conservative defaults.
    return dict(target_block_bytes=2 << 20, num_tc=1, bf16_math=False,
                vmem_limit=None)


def _choose_tile_rows(rows, dtype_bytes, target_block_bytes, num_tc):
    """Sublane-aligned row tile targeting ~target_block_bytes per block."""
    # Native packed tile: 8 rows for 4-byte, 16 for 2-byte, 32 for 1-byte dtypes.
    sublane = max(_SUBLANE, 32 // max(dtype_bytes, 1))

    if rows <= sublane:
        # Full-extent block (block dim == full array dim is always legal).
        return rows

    desired = max(sublane, target_block_bytes // (_LANE * dtype_bytes))
    desired = max(sublane, (desired // sublane) * sublane)
    tile = min(desired, rows)

    if num_tc > 1:
        # On multi-TC chips make sure large slabs produce >= 2 steps per core so
        # the "parallel" axis can shard and each core's pipeline fills.
        # (If profiling shows no 2-TC sharding, switch this axis to
        # pltpu.CORE_PARALLEL.)
        min_blocks = 2 * num_tc
        slab_bytes = rows * _LANE * dtype_bytes
        if slab_bytes >= (2 << 20) and pl.cdiv(rows, tile) < min_blocks:
            tile = -(-rows // min_blocks)
            tile = max(sublane, (tile // sublane) * sublane)
    return tile


def act_fun(x, *, target_block_bytes=None):
    """y = sigmoid(x) * 100, matching torch semantics (elementwise, same shape/dtype)."""
    orig_shape = x.shape
    orig_dtype = x.dtype
    n = x.size
    if n == 0:
        return x

    info = _chip_info()
    if target_block_bytes is None:
        target_block_bytes = info["target_block_bytes"]

    flat = x.reshape(-1)
    rows = n // _LANE
    rem = n % _LANE

    # Tiny (< 1 lane row) inputs: a kernel launch is pure overhead.
    if rows == 0:
        out = (jax.nn.sigmoid(flat.astype(jnp.float32)) * 100.0).astype(orig_dtype)
        return out.reshape(orig_shape)

    aligned = rows * _LANE
    prefix = flat[:aligned] if rem else flat
    x2d = prefix.reshape(rows, _LANE)

    dtype_bytes = jnp.dtype(orig_dtype).itemsize
    tile_rows = _choose_tile_rows(rows, dtype_bytes, target_block_bytes,
                                  info["num_tc"])
    grid = (pl.cdiv(rows, tile_rows),)  # ragged last row-block masked by Pallas

    # bf16-native math on chips with bf16 VPU/EUP; f32 everywhere else.
    if info["bf16_math"] and jnp.dtype(orig_dtype) == jnp.dtype(jnp.bfloat16):
        compute_dtype = jnp.bfloat16
    else:
        compute_dtype = jnp.float32

    cp_kwargs = dict(dimension_semantics=("parallel",))
    if info["vmem_limit"] is not None:
        cp_kwargs["vmem_limit_bytes"] = info["vmem_limit"]

    cost = pl.CostEstimate(
        flops=4 * aligned,
        transcendentals=aligned,
        bytes_accessed=2 * aligned * dtype_bytes,
    )

    out2d = pl.pallas_call(
        functools.partial(_act_fun_kernel, compute_dtype=compute_dtype),
        out_shape=jax.ShapeDtypeStruct((rows, _LANE), orig_dtype),
        grid=grid,
        in_specs=[pl.BlockSpec((tile_rows, _LANE), lambda i: (i, 0))],
        out_specs=pl.BlockSpec((tile_rows, _LANE), lambda i: (i, 0)),
        compiler_params=pltpu.CompilerParams(**cp_kwargs),
        cost_estimate=cost,
    )(x2d)

    out_flat = out2d.reshape(-1)
    if rem:
        # <128-element tail handled by plain XLA (no full-array pad/slice pass).
        tail = flat[aligned:]
        tail_out = (jax.nn.sigmoid(tail.astype(jnp.float32)) * 100.0).astype(orig_dtype)
        out_flat = jnp.concatenate([out_flat, tail_out])
    return out_flat.reshape(orig_shape)


if __name__ == "__main__":
    key = jax.random.PRNGKey(0)

    # Small NCHW-like input consistent with a conv-net activation (128-aligned path).
    x = jax.random.normal(key, (2, 4, 16, 16), dtype=jnp.float32)
    y = act_fun(x)
    jax.block_until_ready(y)
    ref = jax.nn.sigmoid(x) * 100.0
    assert y.shape == x.shape and y.dtype == x.dtype
    assert jnp.allclose(y, ref, atol=1e-4, rtol=1e-4)

    # Ragged path: Pallas on the 128-aligned prefix + XLA tail.
    x2 = jax.random.normal(jax.random.PRNGKey(1), (5, 5, 13), dtype=jnp.float32)
    y2 = act_fun(x2)
    jax.block_until_ready(y2)
    ref2 = jax.nn.sigmoid(x2) * 100.0
    assert y2.shape == x2.shape and y2.dtype == x2.dtype
    assert jnp.allclose(y2, ref2, atol=1e-4, rtol=1e-4)

    # Tiny (<128 element) pure-XLA fallback.
    x3 = jax.random.normal(jax.random.PRNGKey(2), (3, 5, 7), dtype=jnp.float32)
    y3 = act_fun(x3)
    jax.block_until_ready(y3)
    ref3 = jax.nn.sigmoid(x3) * 100.0
    assert y3.shape == x3.shape and y3.dtype == x3.dtype
    assert jnp.allclose(y3, ref3, atol=1e-4, rtol=1e-4)

    print("KERNEL_OK")
</pallas_src>

<mosaic_0001>
module attributes {stable_mosaic.version = 11 : i64} {
  func.func @_act_fun_kernel(%arg0: i32, %arg1: memref<16x128xf32, #tpu.memory_space<vmem>>, %arg2: memref<16x128xf32, #tpu.memory_space<vmem>>) attributes {dimension_semantics = [#tpu.dimension_semantics<parallel>], iteration_bounds = array<i64: 1>, scalar_prefetch = 0 : i64, scratch_operands = 0 : i64, tpu.core_type = #tpu.core_type<tc>, window_params = [{transform_indices = @transform_0, window_bounds = array<i64: 16, 128>}, {transform_indices = @transform_1, window_bounds = array<i64: 16, 128>}]} {
    %c0 = arith.constant 0 : index
    %c0_0 = arith.constant 0 : index
    %0 = vector.load %arg1[%c0, %c0_0] : memref<16x128xf32, #tpu.memory_space<vmem>>, vector<16x128xf32>
    %1 = arith.negf %0 : vector<16x128xf32>
    %2 = math.exp %1 : vector<16x128xf32>
    %cst = arith.constant 1.000000e+00 : f32
    %3 = vector.broadcast %cst : f32 to vector<16x128xf32>
    %4 = arith.addf %3, %2 : vector<16x128xf32>
    %5 = arith.divf %3, %4 : vector<16x128xf32>
    %cst_1 = arith.constant 1.000000e+02 : f32
    %6 = vector.broadcast %cst_1 : f32 to vector<16x128xf32>
    %7 = arith.mulf %5, %6 : vector<16x128xf32>
    %c0_2 = arith.constant 0 : index
    %c0_3 = arith.constant 0 : index
    %8 = vector.load %arg2[%c0_2, %c0_3] : memref<16x128xf32, #tpu.memory_space<vmem>>, vector<16x128xf32>
    tpu.vector_store %arg2[%c0_2, %c0_3], %7 {strides = array<i32>} : memref<16x128xf32, #tpu.memory_space<vmem>>, vector<16x128xf32>,
    return
  }
  func.func @transform_0(%arg0: i32) -> (i32, i32) {
    %c0_i32 = arith.constant 0 : i32
    %c0_i32_0 = arith.constant 0 : i32
    return %arg0, %c0_i32 : i32, i32
  }
  func.func @transform_1(%arg0: i32) -> (i32, i32) {
    %c0_i32 = arith.constant 0 : i32
    %c0_i32_0 = arith.constant 0 : i32
    return %arg0, %c0_i32 : i32, i32
  }
}

</mosaic_0001>

<llo_original>
// kernel: tpu_custom_call.1
$region0: #{tpu_custom_call.1}
  #allocation0 [shape = 'u32[]', space=smem, size = 0x4, offset = 0x4, fixed_abs, tag = 'smem constant byte address 0x4 - core index']
  #allocation1 [shape = 'u32[144,128]{1,0:T(1,128)}', space=vmem, size = 0x12000, scoped, tag = 'internal scratch']
  %s0 = inlined_call_operand.hbm [shape: f32[16,128], index: 0, kind: input, shape index: {}]
  %s1 = inlined_call_operand.hbm [shape: f32[16,128], index: 1, kind: output, shape index: {}]
  %s2 = sld [smem:[#allocation0]]
  $region18: #{tpu_custom_call.1} parent=0
    _
  %s4 = ssub.s32 1, %s2
  %s5 = scalar_select 0, %s4, %s2
  $region1: #{tpu_custom_call.1} parent=0
    #allocation2 [shape = 'u8[8192]{0}', space=vmem, size = 0x2000, scoped, tag = 'input window, operand 0, single buffered']
    #allocation3 [shape = 's32[1]{0}', space=sflag, size = 0x4, scoped, tag = 'scoped memory for tpu_custom_call.1']
    #allocation4 [shape = 's32[1]{0}', space=sflag, size = 0x4, scoped, tag = 'scoped memory for tpu_custom_call.1']
    #allocation5 [shape = 'u8[8192]{0}', space=vmem, size = 0x2000, scoped, tag = 'output window, operand 0, single buffered']
    %6 = vsyncpa [#allocation3], 0
    %7 = vsyncpa [#allocation4], 0
    // Predicated region
    $region2: #{tpu_custom_call.1} parent=1 // pred_check
      _
    $region3: #{tpu_custom_call.1} parent=1 // pred_check_branch
      %9 = sbr.rel (0) target = $region5
    $region4: #{tpu_custom_call.1} parent=1 // pred_region
      %s11 = ssub.s32 256, 256
      %12 = vsyncadd [#allocation3], %s11
      %s13 = sshll.u32 [#allocation2], 4
      %s14 = int_to_ptr.vmem [resolvable:$true] %s13
      %19 = dma.hbm_to_vmem [thread:$0]  %s0, 256, %s14, [#allocation3], 128, 128, 8
    $region5: #{tpu_custom_call.1} parent=1 // pred_fallthru
      _
    // Predicated region
    $region6: #{tpu_custom_call.1} parent=1 // pred_check
      _
    $region7: #{tpu_custom_call.1} parent=1 // pred_check_branch
      %21 = sbr.rel (0) target = $region9
    $region8: #{tpu_custom_call.1} parent=1 // pred_region
      %22 = dma.done [#allocation3], 256
    $region9: #{tpu_custom_call.1} parent=1 // pred_fallthru
      _
    %v23 = vld [vmem:[#allocation2] sm:$0xff]
    %v24 = vld [vmem:[#allocation2 + $0x8] sm:$0xff]
    %v25 = vxor.u32 %v23, 2147483648
    %v26 = vxor.u32 %v24, 2147483648
    %v27 = vmul.f32 %v25, 1.442695
    %v28 = vpow.pop %v27
    %v29 = vmul.f32 %v26, 1.442695
    %v30 = vpow.pop %v29
    %v31 = vadd.f32 %v28, 1.0
    %v32 = vadd.f32 %v30, 1.0
    %v33 = vrcp.pop %v31
    %v34 = vmul.f32 1.0, %v33
    %v35 = vrcp.pop %v32
    %v36 = vmul.f32 1.0, %v35
    %v37 = vmul.f32 %v34, 100.0
    %v38 = vmul.f32 %v36, 100.0
    %39 = vst [vmem:[#allocation5] sm:$0xff] %v37
    %40 = vst [vmem:[#allocation5 + $0x8] sm:$0xff] %v38
    // Predicated region
    $region10: #{tpu_custom_call.1} parent=1 // pred_check
      _
    $region11: #{tpu_custom_call.1} parent=1 // pred_check_branch
      %42 = sbr.rel (0) target = $region13
    $region12: #{tpu_custom_call.1} parent=1 // pred_region
      %s44 = ssub.s32 256, 256
      %45 = vsyncadd [#allocation4], %s44
      %s46 = sshll.u32 [#allocation5], 4
      %s47 = int_to_ptr.vmem [resolvable:$true] %s46
      %52 = dma.vmem_to_hbm [thread:$0]  %s47, 256, %s1, [#allocation4], 128, 128, 8
    $region13: #{tpu_custom_call.1} parent=1 // pred_fallthru
      _
    // Predicated region
    $region14: #{tpu_custom_call.1} parent=1 // pred_check
      _
    $region15: #{tpu_custom_call.1} parent=1 // pred_check_branch
      %54 = sbr.rel (0) target = $region17
    $region16: #{tpu_custom_call.1} parent=1 // pred_region
      %55 = dma.done [#allocation4], 256
    $region17: #{tpu_custom_call.1} parent=1 // pred_fallthru
      _
    %56 = vsyncpa [#allocation3], 1
    %57 = vsyncpa [#allocation4], 1

</llo_original>
